<compile_context>
chip_gen: v7x
topology: tpu7x:2x2x1
jax: 0.10.0
libtpu: 0.0.40
codegen_flags: <defaults>
</compile_context>

<pallas_src>
import functools
import math

import jax
import jax.numpy as jnp
from jax.experimental import pallas as pl
from jax.experimental.pallas import tpu as pltpu


# ----------------------------------------------------------------------------
# Host-side helpers
# ----------------------------------------------------------------------------

def _pick_seq_tile(s):
    """Sequence tile: never below 128 rows unless the whole sequence is shorter."""
    if s <= 128:
        return s
    for t in (512, 256, 128):
        if s % t == 0:
            return t
    for t in range(512, 7, -8):          # awkward lengths: largest mult-of-8 divisor
        if s % t == 0:
            return t
    return s                              # full sequence as one tile (always legal)


def _pick_group_size(num_heads, d_k):
    """Smallest head-group so the group lane width (g * d_k) reaches 128."""
    for g in range(1, num_heads + 1):
        if num_heads % g == 0 and g * d_k >= 128:
            return g
    return num_heads


def _vmem_limit_bytes():
    """Generation-aware VMEM cap: ~7/8 of physical (112 MiB v5e/v6e, 56 MiB v7x)."""
    try:
        cap = getattr(pltpu.get_tpu_info(), "vmem_capacity_bytes", None)
        if cap:
            return int(cap) * 7 // 8
    except Exception:
        pass
    return 64 * 1024 * 1024


def prepare_params(params, num_heads, mxu_dtype=jnp.bfloat16):
    """One-time weight layout prep (call at load time, NOT per forward).

    Weights are stored transposed (y = x @ W_t + b) and split into head groups
    of `heads_per_group` consecutive heads; 1/sqrt(d_k) is folded into Wq/bq;
    matmul operands are pre-cast to `mxu_dtype`; biases stay f32; the fused
    QKV weight used by the self-attention path is built here.
    """
    D = params["wq_t"].shape[0]
    assert D % num_heads == 0, "d_model must be divisible by num_heads"
    d_k = D // num_heads
    hpg = _pick_group_size(num_heads, d_k)
    G = num_heads // hpg
    GK = hpg * d_k
    inv_sqrt_dk = 1.0 / math.sqrt(d_k)

    def split_in(w_t, scale=1.0):          # (D, D) -> (G, D, GK)
        return (w_t * scale).reshape(D, G, GK).transpose(1, 0, 2).astype(mxu_dtype)

    def split_bias(b, scale=1.0):          # (1, D) -> (G, 1, GK), kept f32
        return (b * scale).reshape(G, 1, GK).astype(jnp.float32)

    wq = split_in(params["wq_t"], inv_sqrt_dk)
    wk = split_in(params["wk_t"])
    wv = split_in(params["wv_t"])
    bq = split_bias(params["bq"], inv_sqrt_dk)
    bk = split_bias(params["bk"])
    bv = split_bias(params["bv"])

    return dict(
        wq=wq, wk=wk, wv=wv, bq=bq, bk=bk, bv=bv,
        wqkv=jnp.concatenate([wq, wk, wv], axis=-1),            # (G, D, 3*GK)
        bqkv=jnp.concatenate([bq, bk, bv], axis=-1),            # (G, 1, 3*GK)
        wd=params["wd_t"].reshape(G, GK, D).astype(mxu_dtype),  # (G, GK, D)
        bd=params["bd"].astype(jnp.float32),                    # (1, D)
        num_heads=num_heads, heads_per_group=hpg, num_groups=G,
        d_k=d_k, gk=GK, d_model=D, mxu_dtype=mxu_dtype,
    )


# ----------------------------------------------------------------------------
# Kernels
# ----------------------------------------------------------------------------

def _proj_kernel(x_ref, w_ref, b_ref, y_ref):
    """y[b, g, rows, :] = x[b, rows, :] @ w[g] + b[g]   (one head group)."""
    g = pl.program_id(2)
    y = jnp.dot(x_ref[0], w_ref[0], preferred_element_type=jnp.float32)
    y_ref[0, 0] = (y + b_ref[g]).astype(y_ref.dtype)


def _proj_self_kernel(x_ref, w_ref, b_ref, q_ref, k_ref, v_ref, *, gk):
    """Fused Q/K/V projection for self-attention: the activation is read once
    and multiplied by the lane-concatenated (D, 3*GK) weight of one group."""
    g = pl.program_id(2)
    y = jnp.dot(x_ref[0], w_ref[0], preferred_element_type=jnp.float32) + b_ref[g]
    q_ref[0, 0] = y[:, :gk].astype(q_ref.dtype)
    k_ref[0, 0] = y[:, gk:2 * gk].astype(k_ref.dtype)
    v_ref[0, 0] = y[:, 2 * gk:].astype(v_ref.dtype)


def _attn_kernel(q_ref, k_ref, v_ref, wd_ref, bd_ref, o_ref, acc_ref, ctx_ref,
                 *, num_groups, heads_per_group, d_k, mxu_dtype):
    """Attention for one (batch, query-tile, head-group) grid point.

    Head-group axis is innermost ("arbitrary"): each group's context is folded
    through its slice of the output projection into the resident f32
    accumulator (bias init at g==0, single write-out at the last group).
    1/sqrt(d_k) is already folded into Q.
    """
    g = pl.program_id(2)

    @pl.when(g == 0)
    def _init():
        acc_ref[...] = jnp.broadcast_to(bd_ref[...], acc_ref.shape).astype(jnp.float32)

    q = q_ref[0, 0]                                   # (TQ, GK)  mxu_dtype, pre-scaled
    k = k_ref[0, 0]                                   # (Skv, GK)
    v = v_ref[0, 0]                                   # (Skv, GK)

    def one_head(hh):
        lo, hi = hh * d_k, (hh + 1) * d_k
        s = jax.lax.dot_general(q[:, lo:hi], k[:, lo:hi],
                                (((1,), (1,)), ((), ())),
                                preferred_element_type=jnp.float32)     # (TQ, Skv)
        s = s - jnp.max(s, axis=-1, keepdims=True)
        p = jnp.exp(s)
        l = jnp.sum(p, axis=-1, keepdims=True)                          # (TQ, 1)
        ctx_h = jnp.dot(p.astype(mxu_dtype), v[:, lo:hi],
                        preferred_element_type=jnp.float32)             # (TQ, d_k)
        # Deferred softmax normalization: exact divide on the small context
        # instead of normalizing the (TQ, Skv) probability tile.
        return ctx_h / l

    if heads_per_group == 1:
        ctx = one_head(0)
    else:
        for hh in range(heads_per_group):
            ctx_ref[:, hh * d_k:(hh + 1) * d_k] = one_head(hh)
        ctx = ctx_ref[...]                                              # (TQ, GK)

    acc_ref[...] += jnp.dot(ctx.astype(mxu_dtype), wd_ref[0],
                            preferred_element_type=jnp.float32)

    @pl.when(g == num_groups - 1)
    def _finalize():
        o_ref[0] = acc_ref[...].astype(o_ref.dtype)


# ----------------------------------------------------------------------------
# Pallas-call wrappers
# ----------------------------------------------------------------------------

def _project(x, w, b):
    """(B, S, D) @ (G, D, N) + (G, 1, N) -> (B, G, S, N) in x.dtype."""
    B, S, D = x.shape
    G, _, N = w.shape
    TR = _pick_seq_tile(S)
    NR = S // TR
    return pl.pallas_call(
        _proj_kernel,
        out_shape=jax.ShapeDtypeStruct((B, G, S, N), x.dtype),
        grid=(B, NR, G),
        in_specs=[
            pl.BlockSpec((1, TR, D), lambda bi, r, gi: (bi, r, 0)),   # x (reused over g)
            pl.BlockSpec((1, D, N), lambda bi, r, gi: (gi, 0, 0)),    # per-group weight
            pl.BlockSpec((G, 1, N), lambda bi, r, gi: (0, 0, 0)),     # biases, resident
        ],
        out_specs=pl.BlockSpec((1, 1, TR, N), lambda bi, r, gi: (bi, gi, r, 0)),
        compiler_params=pltpu.CompilerParams(
            dimension_semantics=("parallel", "parallel", "arbitrary"),
            vmem_limit_bytes=_vmem_limit_bytes()),
        cost_estimate=pl.CostEstimate(
            flops=int(2 * B * S * D * G * N),
            transcendentals=0,
            bytes_accessed=int(2 * x.size * x.dtype.itemsize
                               + B * NR * w.size * w.dtype.itemsize)),
    )(x, w, b)


def _project_self(x, prep):
    """Fused Q/K/V projection for self-attention: x is read once per row tile."""
    B, S, D = x.shape
    G, GK = prep["num_groups"], prep["gk"]
    TR = _pick_seq_tile(S)
    NR = S // TR
    out = jax.ShapeDtypeStruct((B, G, S, GK), x.dtype)
    ospec = pl.BlockSpec((1, 1, TR, GK), lambda bi, r, gi: (bi, gi, r, 0))
    return pl.pallas_call(
        functools.partial(_proj_self_kernel, gk=GK),
        out_shape=(out, out, out),
        grid=(B, NR, G),
        in_specs=[
            pl.BlockSpec((1, TR, D), lambda bi, r, gi: (bi, r, 0)),
            pl.BlockSpec((1, D, 3 * GK), lambda bi, r, gi: (gi, 0, 0)),
            pl.BlockSpec((G, 1, 3 * GK), lambda bi, r, gi: (0, 0, 0)),
        ],
        out_specs=(ospec, ospec, ospec),
        compiler_params=pltpu.CompilerParams(
            dimension_semantics=("parallel", "parallel", "arbitrary"),
            vmem_limit_bytes=_vmem_limit_bytes()),
        cost_estimate=pl.CostEstimate(
            flops=int(6 * B * S * D * D),
            transcendentals=0,
            bytes_accessed=int(4 * x.size * x.dtype.itemsize
                               + B * NR * prep["wqkv"].size
                               * prep["wqkv"].dtype.itemsize)),
    )(x, prep["wqkv"], prep["bqkv"])


def _attention(qp, kp, vp, prep, out_dtype):
    B, G, Sq, GK = qp.shape
    Skv = kp.shape[2]
    D = prep["d_model"]
    H = prep["num_heads"]
    TQ = _pick_seq_tile(Sq)
    NQ = Sq // TQ
    kernel = functools.partial(
        _attn_kernel, num_groups=G, heads_per_group=prep["heads_per_group"],
        d_k=prep["d_k"], mxu_dtype=prep["mxu_dtype"])
    return pl.pallas_call(
        kernel,
        out_shape=jax.ShapeDtypeStruct((B, Sq, D), out_dtype),
        grid=(B, NQ, G),
        in_specs=[
            pl.BlockSpec((1, 1, TQ, GK), lambda bi, t, gi: (bi, gi, t, 0)),    # Q tile
            pl.BlockSpec((1, 1, Skv, GK), lambda bi, t, gi: (bi, gi, 0, 0)),   # K (full S)
            pl.BlockSpec((1, 1, Skv, GK), lambda bi, t, gi: (bi, gi, 0, 0)),   # V (full S)
            pl.BlockSpec((1, GK, D), lambda bi, t, gi: (gi, 0, 0)),            # Wd group
            pl.BlockSpec((1, D), lambda bi, t, gi: (0, 0)),                    # bd, resident
        ],
        out_specs=pl.BlockSpec((1, TQ, D), lambda bi, t, gi: (bi, t, 0)),
        scratch_shapes=[pltpu.VMEM((TQ, D), jnp.float32),      # output accumulator
                        pltpu.VMEM((TQ, GK), jnp.float32)],    # per-group ctx staging
        compiler_params=pltpu.CompilerParams(
            dimension_semantics=("parallel", "parallel", "arbitrary"),
            vmem_limit_bytes=_vmem_limit_bytes()),
        cost_estimate=pl.CostEstimate(
            flops=int(4 * B * Sq * Skv * D + 2 * B * Sq * D * D),
            transcendentals=int(B * H * Sq * Skv),
            bytes_accessed=int(qp.size * qp.dtype.itemsize
                               + NQ * (kp.size + vp.size) * kp.dtype.itemsize
                               + B * Sq * D * jnp.dtype(out_dtype).itemsize)),
    )(qp, kp, vp, prep["wd"], prep["bd"])


def mha_forward(q, k, v, prepared):
    """MultiHeadedAttention forward (mask=None, eval-mode dropout == identity).

    `prepared` comes from prepare_params() (built once at load time).
    Self-attention (q is k is v, by object identity) takes the fused
    single-read QKV projection; equal-but-distinct arrays take the (equally
    correct) general path.
    """
    mxu_dtype = prepared["mxu_dtype"]
    out_dtype = q.dtype
    if (q is k) and (k is v):
        qp, kp, vp = _project_self(q.astype(mxu_dtype), prepared)
    else:
        # TODO(synk): fuse the K and V projections into one call when key is value.
        qp = _project(q.astype(mxu_dtype), prepared["wq"], prepared["bq"])
        kp = _project(k.astype(mxu_dtype), prepared["wk"], prepared["bk"])
        vp = _project(v.astype(mxu_dtype), prepared["wv"], prepared["bv"])
    return _attention(qp, kp, vp, prepared, out_dtype)


# ----------------------------------------------------------------------------
# Params, reference, demo
# ----------------------------------------------------------------------------

def init_params(key, d_model):
    """Deterministic nn.Linear-style init: U(-1/sqrt(fan_in), 1/sqrt(fan_in))."""
    bound = 1.0 / math.sqrt(d_model)
    keys = jax.random.split(key, 8)

    def lin(kw, kb):
        w = jax.random.uniform(kw, (d_model, d_model), jnp.float32, -bound, bound)
        b = jax.random.uniform(kb, (1, d_model), jnp.float32, -bound, bound)
        return w.T, b   # store W^T so kernels compute x @ W_t + b

    wq_t, bq = lin(keys[0], keys[1])
    wk_t, bk = lin(keys[2], keys[3])
    wv_t, bv = lin(keys[4], keys[5])
    wd_t, bd = lin(keys[6], keys[7])
    return dict(wq_t=wq_t, bq=bq, wk_t=wk_t, bk=bk,
                wv_t=wv_t, bv=bv, wd_t=wd_t, bd=bd)


def mha_reference(q, k, v, params, *, num_heads):
    """Pure-JAX f32 reference matching the PyTorch forward (mask=None, eval)."""
    B, S, D = q.shape
    d_k = D // num_heads

    def proj(x, w_t, b):
        y = x @ w_t + b[0]
        return y.reshape(B, -1, num_heads, d_k).transpose(0, 2, 1, 3)

    qh = proj(q, params["wq_t"], params["bq"])
    kh = proj(k, params["wk_t"], params["bk"])
    vh = proj(v, params["wv_t"], params["bv"])
    scores = jnp.einsum("bhqd,bhkd->bhqk", qh, kh) / math.sqrt(d_k)
    attn = jax.nn.softmax(scores, axis=-1)
    x = jnp.einsum("bhqk,bhkd->bhqd", attn, vh)
    x = x.transpose(0, 2, 1, 3).reshape(B, S, D)
    return x @ params["wd_t"] + params["bd"][0]


if __name__ == "__main__":
    B, S, D, H = 2, 8, 32, 4

    key = jax.random.PRNGKey(0)
    kq, kk, kv_, kx, kp_ = jax.random.split(key, 5)
    q = jax.random.normal(kq, (B, S, D), jnp.float32)
    k = jax.random.normal(kk, (B, S, D), jnp.float32)
    v = jax.random.normal(kv_, (B, S, D), jnp.float32)
    x = jax.random.normal(kx, (B, S, D), jnp.float32)
    params = init_params(kp_, D)

    # Weight layouts prepared ONCE (not inside the forward).
    prepared_f32 = prepare_params(params, H, mxu_dtype=jnp.float32)
    prepared_bf16 = prepare_params(params, H, mxu_dtype=jnp.bfloat16)

    # Cross-attention, f32 operands: tight check (softmax normalization is exact).
    out_cross = jax.block_until_ready(mha_forward(q, k, v, prepared_f32))
    ref_cross = mha_reference(q, k, v, params, num_heads=H)
    assert out_cross.shape == (B, S, D)
    assert jnp.allclose(out_cross, ref_cross, atol=2e-2, rtol=2e-2), \
        "cross-attention (f32) mismatch vs reference"

    # Self-attention fused path, bf16 operands / bf16 Q,K,V intermediates.
    out_self = jax.block_until_ready(mha_forward(x, x, x, prepared_bf16))
    ref_self = mha_reference(x, x, x, params, num_heads=H)
    assert out_self.shape == (B, S, D)
    assert jnp.allclose(out_self, ref_self, atol=1.5e-1, rtol=1.5e-1), \
        "self-attention (bf16) mismatch vs reference"

    # Cross path with bf16 operands as well.
    out_cross_bf16 = jax.block_until_ready(mha_forward(q, k, v, prepared_bf16))
    assert jnp.allclose(out_cross_bf16, ref_cross, atol=1.5e-1, rtol=1.5e-1), \
        "cross-attention (bf16) mismatch vs reference"

    print("KERNEL_OK")
</pallas_src>

<mosaic_0001>
module attributes {stable_mosaic.version = 11 : i64} {
  func.func @_proj_kernel(%arg0: i32, %arg1: i32, %arg2: i32, %arg3: memref<1x8x32xf32, #tpu.memory_space<vmem>>, %arg4: memref<1x32x32xf32, #tpu.memory_space<vmem>>, %arg5: memref<1x1x32xf32, #tpu.memory_space<vmem>>, %arg6: memref<1x1x8x32xf32, #tpu.memory_space<vmem>>) attributes {dimension_semantics = [#tpu.dimension_semantics<parallel>, #tpu.dimension_semantics<parallel>, #tpu.dimension_semantics<arbitrary>], iteration_bounds = array<i64: 2, 1, 1>, scalar_prefetch = 0 : i64, scratch_operands = 0 : i64, tpu.core_type = #tpu.core_type<tc>, window_params = [{transform_indices = @transform_0, window_bounds = array<i64: 1, 8, 32>}, {transform_indices = @transform_1, window_bounds = array<i64: 1, 32, 32>}, {pipeline_mode = #tpu.pipeline_mode<synchronous>, transform_indices = @transform_2, window_bounds = array<i64: 1, 1, 32>}, {transform_indices = @transform_3, window_bounds = array<i64: 1, 1, 8, 32>}]} {
    %c0 = arith.constant 0 : index
    %c0_0 = arith.constant 0 : index
    %c0_1 = arith.constant 0 : index
    %0 = vector.load %arg3[%c0, %c0_0, %c0_1] : memref<1x8x32xf32, #tpu.memory_space<vmem>>, vector<1x8x32xf32>
    %1 = vector.shape_cast %0 : vector<1x8x32xf32> to vector<8x32xf32>
    %c0_2 = arith.constant 0 : index
    %c0_3 = arith.constant 0 : index
    %c0_4 = arith.constant 0 : index
    %2 = vector.load %arg4[%c0_2, %c0_3, %c0_4] : memref<1x32x32xf32, #tpu.memory_space<vmem>>, vector<1x32x32xf32>
    %3 = vector.shape_cast %2 : vector<1x32x32xf32> to vector<32x32xf32>
    %cst = arith.constant dense<0.000000e+00> : vector<8x32xf32>
    %4 = tpu.matmul %1, %3, %cst {dimension_numbers = #tpu.dot_dimension_numbers<[1], [0], [0], [1], [0, 0, 1, 1], [], []>} : vector<8x32xf32>, vector<32x32xf32>, vector<8x32xf32> -> vector<8x32xf32>
    %5 = arith.index_cast %arg2 : i32 to index
    %c0_5 = arith.constant 0 : index
    %c0_6 = arith.constant 0 : index
    %6 = vector.load %arg5[%5, %c0_5, %c0_6] : memref<1x1x32xf32, #tpu.memory_space<vmem>>, vector<1x1x32xf32>
    %7 = vector.shape_cast %6 : vector<1x1x32xf32> to vector<1x32xf32>
    %8 = vector.broadcast %7 : vector<1x32xf32> to vector<8x32xf32>
    %9 = arith.addf %4, %8 : vector<8x32xf32>
    %c0_7 = arith.constant 0 : index
    %c0_8 = arith.constant 0 : index
    %c0_9 = arith.constant 0 : index
    %c0_10 = arith.constant 0 : index
    %10 = vector.load %arg6[%c0_7, %c0_8, %c0_9, %c0_10] : memref<1x1x8x32xf32, #tpu.memory_space<vmem>>, vector<1x1x8x32xf32>
    %11 = vector.shape_cast %10 : vector<1x1x8x32xf32> to vector<8x32xf32>
    %12 = vector.shape_cast %9 : vector<8x32xf32> to vector<1x1x8x32xf32>
    tpu.vector_store %arg6[%c0_7, %c0_8, %c0_9, %c0_10], %12 {strides = array<i32>} : memref<1x1x8x32xf32, #tpu.memory_space<vmem>>, vector<1x1x8x32xf32>,
    return
  }
  func.func @transform_0(%arg0: i32, %arg1: i32, %arg2: i32) -> (i32, i32, i32) {
    %c0_i32 = arith.constant 0 : i32
    %c0_i32_0 = arith.constant 0 : i32
    return %arg0, %arg1, %c0_i32 : i32, i32, i32
  }
  func.func @transform_1(%arg0: i32, %arg1: i32, %arg2: i32) -> (i32, i32, i32) {
    %c0_i32 = arith.constant 0 : i32
    %c0_i32_0 = arith.constant 0 : i32
    %c0_i32_1 = arith.constant 0 : i32
    return %arg2, %c0_i32, %c0_i32_0 : i32, i32, i32
  }
  func.func @transform_2(%arg0: i32, %arg1: i32, %arg2: i32) -> (i32, i32, i32) {
    %c0_i32 = arith.constant 0 : i32
    %c0_i32_0 = arith.constant 0 : i32
    %c0_i32_1 = arith.constant 0 : i32
    %c0_i32_2 = arith.constant 0 : i32
    return %c0_i32, %c0_i32_0, %c0_i32_1 : i32, i32, i32
  }
  func.func @transform_3(%arg0: i32, %arg1: i32, %arg2: i32) -> (i32, i32, i32, i32) {
    %c0_i32 = arith.constant 0 : i32
    %c0_i32_0 = arith.constant 0 : i32
    return %arg0, %arg2, %arg1, %c0_i32 : i32, i32, i32, i32
  }
}

</mosaic_0001>

<llo_original>
// kernel: tpu_custom_call.1
$region0: #{tpu_custom_call.1}
  #allocation0 [shape = 'u32[]', space=smem, size = 0x4, offset = 0x4, fixed_abs, tag = 'smem constant byte address 0x4 - core index']
  #allocation1 [shape = 'u32[144,128]{1,0:T(1,128)}', space=vmem, size = 0x12000, scoped, tag = 'internal scratch']
  %s0 = inlined_call_operand.hbm [shape: f32[2,8,32], index: 0, kind: input, shape index: {}]
  %s1 = inlined_call_operand.hbm [shape: f32[1,32,32], index: 1, kind: input, shape index: {}]
  %s2 = inlined_call_operand.hbm [shape: f32[1,1,32], index: 2, kind: input, shape index: {}]
  %s3 = inlined_call_operand.hbm [shape: f32[2,1,8,32], index: 3, kind: output, shape index: {}]
  %s4 = sld [smem:[#allocation0]]
  $region57: #{tpu_custom_call.1} parent=0
    _
  %s6 = ssub.s32 1, %s4
  %s7 = scalar_select 0, %s6, %s4
  $region1: #{tpu_custom_call.1} parent=0
    #allocation2 [shape = 'u8[8192]{0}', space=vmem, size = 0x2000, scoped, tag = 'input window, operand 0']
    #allocation3 [shape = 's32[2]{0}', space=sflag, size = 0x8, scoped, tag = 'scoped memory for tpu_custom_call.1']
    #allocation4 [shape = 's32[2]{0}', space=sflag, size = 0x8, scoped, tag = 'scoped memory for tpu_custom_call.1']
    #allocation5 [shape = 'u8[16384]{0}', space=vmem, size = 0x4000, scoped, tag = 'input window, operand 1, single buffered']
    #allocation6 [shape = 's32[1]{0}', space=sflag, size = 0x4, scoped, tag = 'scoped memory for tpu_custom_call.1']
    #allocation7 [shape = 'u8[512]{0}', space=vmem, size = 0x400, scoped, tag = 'input window, operand 2, single buffered']
    #allocation8 [shape = 'u8[8192]{0}', space=vmem, size = 0x2000, scoped, tag = 'output window, operand 0']
    %8 = vsyncpa [#allocation3], 0
    %s9 = scalar_lea.sflag [#allocation3], 1
    %10 = vsyncpa %s9, 0
    %11 = vsyncpa [#allocation6], 0
    %12 = vsyncpa [#allocation4], 0
    %s13 = scalar_lea.sflag [#allocation4], 1
    %14 = vsyncpa %s13, 0
    loop: start=0, step=1, limit=4
    $region2: #{tpu_custom_call.1} parent=1 // loop_pre_header
      _
    $region3: #{tpu_custom_call.1} parent=1 // loop_header
      %s16 = sphi 0, %s20
      %p17 = scmp.ge.s32.totalorder %s16, 4
      %s23 = sphi 0, %s42
      %s24 = sphi 0, %s38
      %s25 = sphi 0, %s34
      %s26 = sphi 0, %s23
      %s27 = sphi 0, %s24
      %s28 = sphi 0, %s25
      %s29 = sphi 0, %s26
      %s30 = sphi 0, %s27
      %s31 = sphi 0, %s28
      %s47 = sphi 0, %s49
      %s50 = sphi 0, %s47
      %s51 = sphi 0, %s50
      %s67 = sphi 0, %s51
      %s73 = sphi 0, %s75
      %s76 = sphi 0, %s73
      %s77 = sphi 0, %s76
      %s93 = sphi 0, %s77
      %s97 = sphi 0, %s97
      %s99 = sphi 0, %s97
      %s100 = sphi 0, %s99
      %s114 = sphi 0, %s100
      %s124 = sphi 0, %s126
      %s127 = sphi 0, %s124
      %s128 = sphi 0, %s127
      %s144 = sphi 0, %s128
    $region4: #{tpu_custom_call.1} parent=1 // loop_header_branch
      %19 = sbr.rel (%p17) target = $region8
    $region5: #{tpu_custom_call.1} parent=1 // loop_body
      %s21 = ssub.s32 %s16, 1
      %s22 = ssub.s32 %s16, 2
      %s32 = sadd.s32 1, %s25
      %p33 = scmp.ge.s32.totalorder %s32, 1
      %s34 = scalar_select %p33, 0, %s32
      %s35 = sadd.s32 1, %s24
      %s36 = scalar_select %p33, %s35, %s24
      %p37 = scmp.ge.s32.totalorder %s36, 1
      %s38 = scalar_select %p37, 0, %s36
      %s39 = sadd.s32 1, %s23
      %s40 = scalar_select %p37, %s39, %s23
      %p41 = scmp.ge.s32.totalorder %s40, 2
      %s42 = scalar_select %p41, 0, %s40
      %s43 = ssub.s32 %s23, %s42
      %s44 = ssub.s32 %s24, %s38
      %s45 = sor.u32 %s43, %s44
      %p46 = scmp.eq.s32.totalorder %s45, 0
      %s48 = sadd.s32 %s47, 1
      %s49 = scalar_select %p46, %s47, %s48
      %p52 = pneg %p46
      %p53 = scmp.eq.s32.totalorder %s16, 1
      %p54 = por %p52, %p53
      %p55 = scmp.ne.s32.totalorder %s47, %s50
      %p56 = scmp.eq.s32.totalorder %s16, 0
      %p57 = por %p55, %p56
      %p58 = scmp.ne.s32.totalorder %s47, %s50
      %p59 = scmp.eq.s32.totalorder %s21, 1
      %p60 = por %p58, %p59
      %p61 = scmp.ne.s32.totalorder %s50, %s51
      %p62 = scmp.eq.s32.totalorder %s21, 0
      %p63 = por %p61, %p62
      %p64 = scmp.ne.s32.totalorder %s50, %s51
      %p65 = scmp.eq.s32.totalorder %s22, 1
      %p66 = por %p64, %p65
      %p68 = scmp.ne.s32.totalorder %s51, %s67
      %p69 = scmp.eq.s32.totalorder %s22, 0
      %p70 = por %p68, %p69
      %s71 = ssub.s32 %s25, %s34
      %p72 = scmp.eq.s32.totalorder %s71, 0
      %s74 = sadd.s32 %s73, 1
      %s75 = scalar_select %p72, %s73, %s74
      %p78 = pneg %p72
      %p79 = scmp.eq.s32.totalorder %s16, 1
      %p80 = por %p78, %p79
      %p81 = scmp.ne.s32.totalorder %s73, %s76
      %p82 = scmp.eq.s32.totalorder %s16, 0
      %p83 = por %p81, %p82
      %p84 = scmp.ne.s32.totalorder %s73, %s76
      %p85 = scmp.eq.s32.totalorder %s21, 1
      %p86 = por %p84, %p85
      %p87 = scmp.ne.s32.totalorder %s76, %s77
      %p88 = scmp.eq.s32.totalorder %s21, 0
      %p89 = por %p87, %p88
      %p90 = scmp.ne.s32.totalorder %s76, %s77
      %p91 = scmp.eq.s32.totalorder %s22, 1
      %p92 = por %p90, %p91
      %p94 = scmp.ne.s32.totalorder %s77, %s93
      %p95 = scmp.eq.s32.totalorder %s22, 0
      %p96 = por %p94, %p95
      %s98 = sadd.s32 %s97, 1
      %p101 = scmp.eq.s32.totalorder %s16, 1
      %p102 = scmp.ne.s32.totalorder %s97, %s99
      %p103 = scmp.eq.s32.totalorder %s16, 0
      %p104 = por %p102, %p103
      %p105 = scmp.ne.s32.totalorder %s97, %s99
      %p106 = scmp.eq.s32.totalorder %s21, 1
      %p107 = por %p105, %p106
      %p108 = scmp.ne.s32.totalorder %s99, %s100
      %p109 = scmp.eq.s32.totalorder %s21, 0
      %p110 = por %p108, %p109
      %p111 = scmp.ne.s32.totalorder %s99, %s100
      %p112 = scmp.eq.s32.totalorder %s22, 1
      %p113 = por %p111, %p112
      %p115 = scmp.ne.s32.totalorder %s100, %s114
      %p116 = scmp.eq.s32.totalorder %s22, 0
      %p117 = por %p115, %p116
      %s118 = ssub.s32 %s23, %s42
      %s119 = ssub.s32 %s25, %s34
      %s120 = sor.u32 %s118, %s119
      %s121 = ssub.s32 %s24, %s38
      %s122 = sor.u32 %s120, %s121
      %p123 = scmp.eq.s32.totalorder %s122, 0
      %s125 = sadd.s32 %s124, 1
      %s126 = scalar_select %p123, %s124, %s125
      %p129 = pneg %p123
      %p130 = scmp.eq.s32.totalorder %s16, 1
      %p131 = por %p129, %p130
      %p132 = scmp.ne.s32.totalorder %s124, %s127
      %p133 = scmp.eq.s32.totalorder %s16, 0
      %p134 = por %p132, %p133
      %p135 = scmp.ne.s32.totalorder %s124, %s127
      %p136 = scmp.eq.s32.totalorder %s21, 1
      %p137 = por %p135, %p136
      %p138 = scmp.ne.s32.totalorder %s127, %s128
      %p139 = scmp.eq.s32.totalorder %s21, 0
      %p140 = por %p138, %p139
      %p141 = scmp.ne.s32.totalorder %s127, %s128
      %p142 = scmp.eq.s32.totalorder %s22, 1
      %p143 = por %p141, %p142
      %p145 = scmp.ne.s32.totalorder %s128, %s144
      %p146 = scmp.eq.s32.totalorder %s22, 0
      %p147 = por %p145, %p146
      %p148 = scmp.le.s32.totalorder 1, %s16
      %p149 = scmp.lt.s32.totalorder %s16, 3
      %p150 = pnand %p148, %p149
      %p151 = pneg %p150
      // Predicated region
      $region9: #{tpu_custom_call.1} parent=5 // pred_check
        _
      $region10: #{tpu_custom_call.1} parent=5 // pred_check_branch
        %153 = sbr.rel (%p150) target = $region12
      $region11: #{tpu_custom_call.1} parent=5 // pred_region
        %s154 = ssub.s32 %s16, 1
        // Predicated region
        $region13: #{tpu_custom_call.1} parent=11 // pred_check
          %p155 = pneg %p89
        $region14: #{tpu_custom_call.1} parent=11 // pred_check_branch
          %157 = sbr.rel (%p155) target = $region16
        $region15: #{tpu_custom_call.1} parent=11 // pred_region
          %s159 = ssub.s32 512, 512
          %160 = vsyncadd [#allocation6], %s159
          %s161 = smul.addr %s28, 4
          %s162 = smul.addr %s161, 128
          %s163 = scalar_lea.hbm %s1, %s162
          %s164 = sshll.u32 [#allocation5], 4
          %s165 = int_to_ptr.vmem [resolvable:$true] %s164
          %170 = dma.hbm_to_vmem [thread:$0]  %s163, 512, %s165, [#allocation6], 128, 128, 8
        $region16: #{tpu_custom_call.1} parent=11 // pred_fallthru
          _
        // Predicated region
        $region17: #{tpu_custom_call.1} parent=11 // pred_check
          %p171 = pneg %p110
        $region18: #{tpu_custom_call.1} parent=11 // pred_check_branch
          %173 = sbr.rel (%p171) target = $region20
        $region19: #{tpu_custom_call.1} parent=11 // pred_region
          %s175 = ssub.s32 16, 16
          %176 = vsyncadd [#allocation6], %s175
          %s178 = sshll.u32 [#allocation7], 4
          %s179 = int_to_ptr.vmem [resolvable:$true] %s178
          %181 = dma.hbm_to_vmem [thread:$0]  %s2, 16, %s179, [#allocation6]
        $region20: #{tpu_custom_call.1} parent=11 // pred_fallthru
          _
      $region12: #{tpu_custom_call.1} parent=5 // pred_fallthru
        _
      %p182 = scmp.lt.s32.totalorder %s16, 2
      // Predicated region
      $region21: #{tpu_custom_call.1} parent=5 // pred_check
        %p183 = pneg %p182
      $region22: #{tpu_custom_call.1} parent=5 // pred_check_branch
        %185 = sbr.rel (%p183) target = $region24
      $region23: #{tpu_custom_call.1} parent=5 // pred_region
        // Predicated region
        $region25: #{tpu_custom_call.1} parent=23 // pred_check
          %p186 = pneg %p57
        $region26: #{tpu_custom_call.1} parent=23 // pred_check_branch
          %188 = sbr.rel (%p186) target = $region28
        $region27: #{tpu_custom_call.1} parent=23 // pred_region
          %s189 = sand.u32 %s47, 1
          %s190 = scalar_lea.sflag [#allocation3], %s189
          %s191 = sand.u32 %s47, 1
          %s192 = smul.addr %s191, 8
          %s193 = scalar_lea.vmem [#allocation2], %s192
          %s195 = ssub.s32 128, 128
          %196 = vsyncadd %s190, %s195
          %s197 = sadd.s32 %s24, %s23
          %s198 = smul.addr %s197, 128
          %s199 = scalar_lea.hbm %s0, %s198
          %s201 = sshll.u32 %s193, 4
          %s202 = int_to_ptr.vmem [resolvable:$true] %s201
          %204 = dma.hbm_to_vmem [thread:$0]  %s199, 128, %s202, %s190
        $region28: #{tpu_custom_call.1} parent=23 // pred_fallthru
          _
      $region24: #{tpu_custom_call.1} parent=5 // pred_fallthru
        _
      %p205 = scmp.le.s32.totalorder 1, %s16
      %p206 = scmp.lt.s32.totalorder %s16, 3
      %p207 = pnand %p205, %p206
      %p208 = pneg %p207
      // Predicated region
      $region29: #{tpu_custom_call.1} parent=5 // pred_check
        _
      $region30: #{tpu_custom_call.1} parent=5 // pred_check_branch
        %210 = sbr.rel (%p207) target = $region32
      $region31: #{tpu_custom_call.1} parent=5 // pred_region
        %s211 = ssub.s32 %s16, 1
        %s212 = sand.u32 %s50, 1
        %s213 = scalar_lea.sflag [#allocation3], %s212
        %s214 = sand.u32 %s50, 1
        %s215 = smul.addr %s214, 8
        %s216 = scalar_lea.vmem [#allocation2], %s215
        // Predicated region
        $region33: #{tpu_custom_call.1} parent=31 // pred_check
          %p217 = pneg %p63
        $region34: #{tpu_custom_call.1} parent=31 // pred_check_branch
          %219 = sbr.rel (%p217) target = $region36
        $region35: #{tpu_custom_call.1} parent=31 // pred_region
          %220 = dma.done %s213, 128
        $region36: #{tpu_custom_call.1} parent=31 // pred_fallthru
          _
        // Predicated region
        $region37: #{tpu_custom_call.1} parent=31 // pred_check
          %p221 = pneg %p89
        $region38: #{tpu_custom_call.1} parent=31 // pred_check_branch
          %223 = sbr.rel (%p221) target = $region40
        $region39: #{tpu_custom_call.1} parent=31 // pred_region
          %224 = dma.done [#allocation6], 512
        $region40: #{tpu_custom_call.1} parent=31 // pred_fallthru
          _
        // Predicated region
        $region41: #{tpu_custom_call.1} parent=31 // pred_check
          %p225 = pneg %p110
        $region42: #{tpu_custom_call.1} parent=31 // pred_check_branch
          %227 = sbr.rel (%p225) target = $region44
        $region43: #{tpu_custom_call.1} parent=31 // pred_region
          %228 = dma.done [#allocation6], 16
        $region44: #{tpu_custom_call.1} parent=31 // pred_fallthru
          _
        %s229 = sand.u32 %s50, 1
        %s230 = scalar_lea.sflag [#allocation3], %s229
        %s231 = sand.u32 %s50, 1
        %s232 = smul.addr %s231, 8
        %s233 = scalar_lea.vmem [#allocation2], %s232
        %p234 = pneg %p63
        %p235 = pneg %p60
        %p236 = pneg %p89
        %p237 = pneg %p86
        %p238 = pneg %p110
        %p239 = pneg %p107
        %p240 = pneg %p140
        %p241 = pneg %p137
        %s242 = sand.u32 %s127, 1
        %s243 = scalar_lea.sflag [#allocation4], %s242
        %s244 = sand.u32 %s127, 1
        %s245 = smul.addr %s244, 8
        %s246 = scalar_lea.vmem [#allocation8], %s245
        %v247 = vld [vmem:[%s216] sm:$0xff]
        %v248 = vld [vmem:[#allocation5] sm:$0xff]
        %v249 = vld [vmem:[#allocation5 + $0x8] sm:$0xff]
        %v250 = vld [vmem:[#allocation5 + $0x10] sm:$0xff]
        %v251 = vld [vmem:[#allocation5 + $0x18] sm:$0xff]
        %s252 = scalar_lea.vmem [#allocation7], %s28
        %v253 = vld [vmem:[%s252] sm:$0x1]
        %v255 = vlaneseq
        %v256 = vshrl.u32 %v255, 7
        %v257 = vsub.s32 0, %v256
        %v258 = vrot.slane %v253, %v257
        %vm260 = vcmask 261120
        %v262 = vsel %vm260, %v247, 0
        %264 = vmatprep.subr.mxu0 0.0
        %265 = vmatpush1.msra.mxu0 %v248
        %266 = vmatprep.subr.mxu0 0.0
        %267 = vmatpush1.msra.mxu0 %v249
        %268 = vmatprep.subr.mxu0 0.0
        %269 = vmatpush1.msra.mxu0 %v250
        %270 = vmatprep.subr.mxu0 0.0
        %271 = vmatpush1.msra.mxu0 %v251
        %272 = vmatprep.subr.mxu0 0.0
        %273 = vmatpush1.msra.mxu0 0.0
        %274 = vmatprep.subr.mxu0 0.0
        %275 = vmatpush1.msra.mxu0 0.0
        %276 = vmatprep.subr.mxu0 0.0
        %277 = vmatpush1.msra.mxu0 0.0
        %278 = vmatprep.subr.mxu0 0.0
        %279 = vmatpush1.msra.mxu0 0.0
        %280 = vmatprep.subr.mxu0 0.0
        %281 = vmatpush1.msra.mxu0 0.0
        %282 = vmatprep.subr.mxu0 0.0
        %283 = vmatpush1.msra.mxu0 0.0
        %284 = vmatprep.subr.mxu0 0.0
        %285 = vmatpush1.msra.mxu0 0.0
        %286 = vmatprep.subr.mxu0 0.0
        %287 = vmatpush1.msra.mxu0 0.0
        %288 = vmatprep.subr.mxu0 0.0
        %289 = vmatpush1.msra.mxu0 0.0
        %290 = vmatprep.subr.mxu0 0.0
        %291 = vmatpush1.msra.mxu0 0.0
        %292 = vmatprep.subr.mxu0 0.0
        %293 = vmatpush1.msra.mxu0 0.0
        %294 = vmatprep.subr.mxu0 0.0
        %295 = vmatpush1.msra.mxu0 0.0
        %296 = vmatprep.subr.mxu0 0.0
        %297 = vmatpush1.msra.mxu0 0.0
        %298 = vmatprep.subr.mxu0 0.0
        %299 = vmatpush1.msra.mxu0 0.0
        %300 = vmatprep.subr.mxu0 0.0
        %301 = vmatpush1.msra.mxu0 0.0
        %302 = vmatprep.subr.mxu0 0.0
        %303 = vmatpush1.msra.mxu0 0.0
        %304 = vmatprep.subr.mxu0 0.0
        %305 = vmatpush1.msra.mxu0 0.0
        %306 = vmatprep.subr.mxu0 0.0
        %307 = vmatpush1.msra.mxu0 0.0
        %308 = vmatprep.subr.mxu0 0.0
        %309 = vmatpush1.msra.mxu0 0.0
        %310 = vmatprep.subr.mxu0 0.0
        %311 = vmatpush1.msra.mxu0 0.0
        %312 = vmatprep.subr.mxu0 0.0
        %313 = vmatpush1.msra.mxu0 0.0
        %314 = vmatprep.subr.mxu0 0.0
        %315 = vmatpush1.msra.mxu0 0.0
        %316 = vmatprep.subr.mxu0 0.0
        %317 = vmatpush1.msra.mxu0 0.0
        %318 = vmatprep.subr.mxu0 0.0
        %319 = vmatpush1.msra.mxu0 0.0
        %320 = vmatprep.subr.mxu0 0.0
        %321 = vmatpush1.msra.mxu0 0.0
        %322 = vmatprep.subr.mxu0 0.0
        %323 = vmatpush1.msra.mxu0 0.0
        %324 = vmatprep.subr.mxu0 0.0
        %325 = vmatpush1.msra.mxu0 0.0
        %326 = vmatprep.subr.mxu0 0.0
        %327 = vmatpush1.msra.mxu0 0.0
        %328 = vmatprep.mubr.f32.mxu0 0.0
        %329 = vmatmul.mubr.f32.gmra.mrb[0].mxu0 %v262
        %v330 = vpop.f32.mrb[0].mxu0
        %v331 = vadd.f32 %v258, %v330
        %v332 = vpop.f32.mrb[0].mxu0
        %333 = vdwg.mxu0
        %334 = vst.msk [vmem:[%s246] sm:$0xff] %vm260, %v331
        %s335 = sand.u32 %s127, 1
        %s336 = scalar_lea.sflag [#allocation4], %s335
        %s337 = sand.u32 %s127, 1
        %s338 = smul.addr %s337, 8
        %s339 = scalar_lea.vmem [#allocation8], %s338
        // Predicated region
        $region45: #{tpu_custom_call.1} parent=31 // pred_check
          %p340 = pneg %p137
        $region46: #{tpu_custom_call.1} parent=31 // pred_check_branch
          %342 = sbr.rel (%p340) target = $region48
        $region47: #{tpu_custom_call.1} parent=31 // pred_region
          %s344 = ssub.s32 128, 128
          %345 = vsyncadd %s336, %s344
          %s346 = sadd.s32 %s27, %s28
          %s347 = sadd.s32 %s346, %s26
          %s348 = smul.addr %s347, 128
          %s349 = scalar_lea.hbm %s3, %s348
          %s351 = sshll.u32 %s339, 4
          %s352 = int_to_ptr.vmem [resolvable:$true] %s351
          %354 = dma.vmem_to_hbm [thread:$0]  %s352, 128, %s349, %s336
        $region48: #{tpu_custom_call.1} parent=31 // pred_fallthru
          _
      $region32: #{tpu_custom_call.1} parent=5 // pred_fallthru
        _
      %p355 = scmp.le.s32.totalorder 2, %s16
      // Predicated region
      $region49: #{tpu_custom_call.1} parent=5 // pred_check
        %p356 = pneg %p355
      $region50: #{tpu_custom_call.1} parent=5 // pred_check_branch
        %358 = sbr.rel (%p356) target = $region52
      $region51: #{tpu_custom_call.1} parent=5 // pred_region
        %s359 = ssub.s32 %s16, 2
        // Predicated region
        $region53: #{tpu_custom_call.1} parent=51 // pred_check
          %p360 = pneg %p143
        $region54: #{tpu_custom_call.1} parent=51 // pred_check_branch
          %362 = sbr.rel (%p360) target = $region56
        $region55: #{tpu_custom_call.1} parent=51 // pred_region
          %s363 = sand.u32 %s128, 1
          %s364 = scalar_lea.sflag [#allocation4], %s363
          %s365 = sand.u32 %s128, 1
          %s366 = smul.addr %s365, 8
          %s367 = scalar_lea.vmem [#allocation8], %s366
          %368 = dma.done %s364, 128
        $region56: #{tpu_custom_call.1} parent=51 // pred_fallthru
          _
      $region52: #{tpu_custom_call.1} parent=5 // pred_fallthru
        _
    $region6: #{tpu_custom_call.1} parent=1 // loop_footer
      %s20 = sadd.s32 1, %s16
    $region7: #{tpu_custom_call.1} parent=1 // loop_footer_branch
      %15 = sbr.rel target = $region3
    $region8: #{tpu_custom_call.1} parent=1 // loop_exit
      _
    %369 = vsyncpa [#allocation3], 1
    %s370 = scalar_lea.sflag [#allocation3], 1
    %371 = vsyncpa %s370, 1
    %372 = vsyncpa [#allocation6], 1
    %373 = vsyncpa [#allocation4], 1
    %s374 = scalar_lea.sflag [#allocation4], 1
    %375 = vsyncpa %s374, 1

</llo_original>
